<compile_context>
chip_gen: v7x
topology: tpu7x:2x2x1
jax: 0.10.0
libtpu: 0.0.40
codegen_flags: <defaults>
</compile_context>

<pallas_src>
import functools
import math

import jax
import jax.numpy as jnp
from jax.experimental import pallas as pl
from jax.experimental.pallas import tpu as pltpu

_PI = math.pi
_TWO_PI = 2.0 * math.pi
_WORN = 512  # iirnet signal.sosfreqz default worN


# --------------------------------------------------------------------------- #
# Divide-free atan2 (== torch.angle(x + i*y)), VPU/EUP only.
# --------------------------------------------------------------------------- #
def _atan_poly(t):
    """atan(t) for 0 <= t <= 1; 8-term odd minimax (A&S 4.4.49), |err| ~ 2e-8."""
    z = t * t
    p = -0.0040540580
    p = p * z + 0.0218612288
    p = p * z - 0.0559098861
    p = p * z + 0.0964200441
    p = p * z - 0.1390853351
    p = p * z + 0.1994653599
    p = p * z - 0.3332985605
    p = p * z + 0.9999993329
    return p * t


def _atan2(y, x):
    """Elementwise atan2(y, x) with one EUP reciprocal and no divides."""
    ax = jnp.abs(x)
    ay = jnp.abs(y)
    hi = jnp.maximum(ax, ay)
    lo = jnp.minimum(ax, ay)
    hi_safe = jnp.where(hi == 0.0, 1.0, hi)
    inv = pl.reciprocal(hi_safe, approx=True)
    inv = inv * (2.0 - hi_safe * inv)            # one Newton step -> full f32 accuracy
    r = _atan_poly(lo * inv)                      # atan(min/max) in [0, pi/4]
    r = jnp.where(ay > ax, _PI / 2.0 - r, r)      # octant fix
    r = jnp.where(x < 0.0, _PI - r, r)            # quadrant fix (sign of x)
    return jnp.where(y < 0.0, -r, r)              # sign of y


# --------------------------------------------------------------------------- #
# Kernel: cascaded biquad responses for all 2B rows + log-mag / wrapped-phase MSE.
# --------------------------------------------------------------------------- #
def _freq_domain_loss_kernel(sos_ref, tab_ref, mask_ref, out_ref, mag_scr, phs_scr, *,
                             batch, n_sections, n_bins, mag_weight, phase_weight, eps):
    rows = 2 * batch                      # rows 0..B-1 = input, rows B..2B-1 = target
    k_pad = tab_ref.shape[-1]
    shape = (rows, k_pad)

    # DFT basis, broadcast once to the full working shape (hoisted out of the unroll).
    c1 = jnp.broadcast_to(tab_ref[0:1, :], shape)
    s1 = jnp.broadcast_to(tab_ref[1:2, :], shape)
    c2 = jnp.broadcast_to(tab_ref[2:3, :], shape)
    s2 = jnp.broadcast_to(tab_ref[3:4, :], shape)

    h_re = jnp.ones(shape, jnp.float32)
    h_im = jnp.zeros(shape, jnp.float32)

    # TODO(synk): for n_sections >~ 16 switch this Python unroll to
    # lax.fori_loop(..., unroll=True) with dynamic coefficient-column reads to bound
    # live ranges (vreg pressure); at S=4 the straight-line form is optimal.
    for s in range(n_sections):
        base = 6 * s
        b0 = sos_ref[:, base + 0:base + 1]        # (2B, 1) -> lane-broadcast
        b1 = sos_ref[:, base + 1:base + 2]
        b2 = sos_ref[:, base + 2:base + 3]
        a0 = sos_ref[:, base + 3:base + 4]
        a1 = sos_ref[:, base + 4:base + 5]
        a2 = sos_ref[:, base + 5:base + 6]
        num_re = b0 + b1 * c1 + b2 * c2
        num_im = -(b1 * s1 + b2 * s2)
        den_re = a0 + a1 * c1 + a2 * c2
        den_im = -(a1 * s1 + a2 * s2)
        d2 = den_re * den_re + den_im * den_im
        inv = pl.reciprocal(d2, approx=True)      # EUP
        inv = inv * (2.0 - d2 * inv)              # Newton refine (keeps f32 accuracy)
        sec_re = (num_re * den_re + num_im * den_im) * inv
        sec_im = (num_im * den_re - num_re * den_im) * inv
        h_re, h_im = (h_re * sec_re - h_im * sec_im,
                      h_re * sec_im + h_im * sec_re)

    # log-magnitude and phase for all 2B rows at once.
    mag = jnp.sqrt(h_re * h_re + h_im * h_im)
    mag_scr[...] = jnp.log(mag + eps)
    phs_scr[...] = _atan2(h_im, h_re)

    # Paired (input - target) differences via sublane-sliced reads of the scratch refs.
    d_mag = mag_scr[pl.ds(0, batch), :] - mag_scr[pl.ds(batch, batch), :]
    d_phs = phs_scr[pl.ds(0, batch), :] - phs_scr[pl.ds(batch, batch), :]

    # Phase wrapping to [-pi, pi): torch.remainder(d + pi, 2*pi) - pi.
    u = d_phs + _PI
    u = u - _TWO_PI * jnp.floor(u * (1.0 / _TWO_PI))
    d_phs = u - _PI

    # Single masked reduction of the weighted squared errors (both means share B*n_bins).
    per_elem = mag_weight * d_mag * d_mag + phase_weight * d_phs * d_phs   # (B, K_pad)
    per_elem = jnp.where(mask_ref[...] > 0.0, per_elem, 0.0)               # drop padding
    total = jnp.sum(per_elem, axis=1, keepdims=True)                       # (B, 1)
    total = jnp.sum(total, axis=0, keepdims=True)                          # (1, 1)
    out_ref[...] = total * (1.0 / float(batch * n_bins))


# --------------------------------------------------------------------------- #
# Wrapper: cached DFT tables, sublane stacking, pallas_call plumbing.
# --------------------------------------------------------------------------- #
@functools.lru_cache(maxsize=8)
def _dft_tables(worN):
    """(cos w, sin w, cos 2w, sin 2w) on the rfft grid, lane-padded, plus validity mask."""
    n_bins = worN // 2 + 1
    k_pad = ((n_bins + 127) // 128) * 128
    k = jnp.arange(n_bins, dtype=jnp.float32)
    w = 2.0 * jnp.pi * k / worN
    tab = jnp.zeros((4, k_pad), jnp.float32)
    tab = tab.at[0, :n_bins].set(jnp.cos(w))
    tab = tab.at[1, :n_bins].set(jnp.sin(w))
    tab = tab.at[2, :n_bins].set(jnp.cos(2.0 * w))
    tab = tab.at[3, :n_bins].set(jnp.sin(2.0 * w))
    mask = jnp.zeros((1, k_pad), jnp.float32).at[0, :n_bins].set(1.0)
    return tab, mask


def freq_domain_loss(input_sos, target_sos, mag_weight=1.0, phase_weight=0.5,
                     eps=1e-8, worN=_WORN):
    """FreqDomainLoss.forward (error='l2') for (B, S, 6) second-order-section tensors."""
    assert input_sos.shape == target_sos.shape and input_sos.shape[-1] == 6
    batch, n_sections, _ = input_sos.shape
    n_bins = worN // 2 + 1
    tab, mask = _dft_tables(worN)
    k_pad = tab.shape[-1]

    # Stack {input, target} along the sublane axis: rows 0..B-1 input, B..2B-1 target.
    sos = jnp.concatenate(
        [input_sos.astype(jnp.float32).reshape(batch, 6 * n_sections),
         target_sos.astype(jnp.float32).reshape(batch, 6 * n_sections)], axis=0)

    kernel = functools.partial(
        _freq_domain_loss_kernel,
        batch=batch, n_sections=n_sections, n_bins=n_bins,
        mag_weight=float(mag_weight), phase_weight=float(phase_weight),
        eps=float(eps))

    # TODO(synk): for large batch on v7x, add a ("parallel",) grid over batch chunks with
    # per-chunk partial sums to engage the second TensorCore (single-TC on v5e/v6e).
    out = pl.pallas_call(
        kernel,
        out_shape=jax.ShapeDtypeStruct((1, 1), jnp.float32),
        in_specs=[
            pl.BlockSpec(memory_space=pltpu.MemorySpace.VMEM),   # stacked sos (2B, 6S)
            pl.BlockSpec(memory_space=pltpu.MemorySpace.VMEM),   # DFT cos/sin table
            pl.BlockSpec(memory_space=pltpu.MemorySpace.VMEM),   # lane-validity mask
        ],
        out_specs=pl.BlockSpec(memory_space=pltpu.MemorySpace.VMEM),
        scratch_shapes=[pltpu.VMEM((2 * batch, k_pad), jnp.float32),   # log|H| rows
                        pltpu.VMEM((2 * batch, k_pad), jnp.float32)],  # angle(H) rows
    )(sos, tab, mask)
    return out[0, 0]


# --------------------------------------------------------------------------- #
# Pure-JAX reference (mirrors torch: sosfreqz + log-mag MSE + wrapped-phase MSE).
# --------------------------------------------------------------------------- #
def reference_freq_domain_loss(input_sos, target_sos, mag_weight=1.0, phase_weight=0.5,
                               eps=1e-8, worN=_WORN):
    k = jnp.arange(worN // 2 + 1, dtype=jnp.float32)
    w = 2.0 * jnp.pi * k / worN
    e1 = jnp.exp(-1j * w).astype(jnp.complex64)
    e2 = jnp.exp(-2j * w).astype(jnp.complex64)

    def resp(sos):
        sos_c = sos.astype(jnp.complex64)
        h = None
        for s in range(sos.shape[-2]):
            num = sos_c[:, s, 0:1] + sos_c[:, s, 1:2] * e1 + sos_c[:, s, 2:3] * e2
            den = sos_c[:, s, 3:4] + sos_c[:, s, 4:5] * e1 + sos_c[:, s, 5:6] * e2
            sec = num / den
            h = sec if h is None else h * sec
        return h

    hi = resp(input_sos)
    ht = resp(target_sos)
    mag_log_loss = jnp.mean(
        (jnp.log(jnp.abs(hi) + eps) - jnp.log(jnp.abs(ht) + eps)) ** 2)
    d = jnp.angle(hi) - jnp.angle(ht)
    d = jnp.mod(d + jnp.pi, 2.0 * jnp.pi) - jnp.pi     # torch.remainder semantics
    phs_loss = jnp.mean(d ** 2)
    return mag_weight * mag_log_loss + phase_weight * phs_loss


if __name__ == "__main__":
    B, S = 2, 4   # batch of 2, four second-order sections per filter
    key = jax.random.PRNGKey(0)
    k_in, k_tg = jax.random.split(key)

    def make_sos(k):
        # Well-conditioned synthetic sos: b0 = a0 = 1, small tail coefficients so the
        # response has no near-zeros/poles on the unit circle (keeps log-mag benign).
        kb, ka = jax.random.split(k)
        b_tail = jax.random.uniform(kb, (B, S, 2), jnp.float32, -0.2, 0.2)
        a_tail = jax.random.uniform(ka, (B, S, 2), jnp.float32, -0.2, 0.2)
        ones = jnp.ones((B, S, 1), jnp.float32)
        return jnp.concatenate([ones, b_tail, ones, a_tail], axis=-1)

    input_sos = make_sos(k_in)
    target_sos = make_sos(k_tg)

    loss = freq_domain_loss(input_sos, target_sos, mag_weight=1.0, phase_weight=0.5)
    loss = jax.block_until_ready(loss)

    ref = reference_freq_domain_loss(input_sos, target_sos, 1.0, 0.5)
    ref = jax.block_until_ready(ref)

    assert bool(jnp.isfinite(loss))
    assert abs(float(loss) - float(ref)) <= 5e-3 * abs(float(ref)) + 1e-4, (
        float(loss), float(ref))
    print("KERNEL_OK")
</pallas_src>

<mosaic_0001>
module attributes {stable_mosaic.version = 11 : i64} {
  func.func @_freq_domain_loss_kernel(%arg0: memref<4x24xf32, #tpu.memory_space<vmem>>, %arg1: memref<4x384xf32, #tpu.memory_space<vmem>>, %arg2: memref<1x384xf32, #tpu.memory_space<vmem>>, %arg3: memref<1x1xf32, #tpu.memory_space<vmem>>, %arg4: memref<4x384xf32, #tpu.memory_space<vmem>>, %arg5: memref<4x384xf32, #tpu.memory_space<vmem>>) attributes {dimension_semantics = [], scalar_prefetch = 0 : i64, scratch_operands = 2 : i64, tpu.core_type = #tpu.core_type<tc>} {
    %c0 = arith.constant 0 : index
    %c0_0 = arith.constant 0 : index
    %0 = vector.load %arg1[%c0, %c0_0] : memref<4x384xf32, #tpu.memory_space<vmem>>, vector<1x384xf32>
    %1 = vector.shape_cast %0 : vector<1x384xf32> to vector<1x384xf32>
    %2 = vector.broadcast %1 : vector<1x384xf32> to vector<4x384xf32>
    %c1 = arith.constant 1 : index
    %c0_1 = arith.constant 0 : index
    %3 = vector.load %arg1[%c1, %c0_1] : memref<4x384xf32, #tpu.memory_space<vmem>>, vector<1x384xf32>
    %4 = vector.shape_cast %3 : vector<1x384xf32> to vector<1x384xf32>
    %5 = vector.broadcast %4 : vector<1x384xf32> to vector<4x384xf32>
    %c2 = arith.constant 2 : index
    %c0_2 = arith.constant 0 : index
    %6 = vector.load %arg1[%c2, %c0_2] : memref<4x384xf32, #tpu.memory_space<vmem>>, vector<1x384xf32>
    %7 = vector.shape_cast %6 : vector<1x384xf32> to vector<1x384xf32>
    %8 = vector.broadcast %7 : vector<1x384xf32> to vector<4x384xf32>
    %c3 = arith.constant 3 : index
    %c0_3 = arith.constant 0 : index
    %9 = vector.load %arg1[%c3, %c0_3] : memref<4x384xf32, #tpu.memory_space<vmem>>, vector<1x384xf32>
    %10 = vector.shape_cast %9 : vector<1x384xf32> to vector<1x384xf32>
    %11 = vector.broadcast %10 : vector<1x384xf32> to vector<4x384xf32>
    %cst = arith.constant 1.000000e+00 : f32
    %12 = vector.broadcast %cst : f32 to vector<4x384xf32>
    %cst_4 = arith.constant 0.000000e+00 : f32
    %13 = vector.broadcast %cst_4 : f32 to vector<4x384xf32>
    %c0_5 = arith.constant 0 : index
    %c0_6 = arith.constant 0 : index
    %14 = vector.load %arg0[%c0_5, %c0_6] : memref<4x24xf32, #tpu.memory_space<vmem>>, vector<4x1xf32>
    %c0_7 = arith.constant 0 : index
    %c1_8 = arith.constant 1 : index
    %15 = vector.load %arg0[%c0_7, %c1_8] : memref<4x24xf32, #tpu.memory_space<vmem>>, vector<4x1xf32>
    %c0_9 = arith.constant 0 : index
    %c2_10 = arith.constant 2 : index
    %16 = vector.load %arg0[%c0_9, %c2_10] : memref<4x24xf32, #tpu.memory_space<vmem>>, vector<4x1xf32>
    %c0_11 = arith.constant 0 : index
    %c3_12 = arith.constant 3 : index
    %17 = vector.load %arg0[%c0_11, %c3_12] : memref<4x24xf32, #tpu.memory_space<vmem>>, vector<4x1xf32>
    %c0_13 = arith.constant 0 : index
    %c4 = arith.constant 4 : index
    %18 = vector.load %arg0[%c0_13, %c4] : memref<4x24xf32, #tpu.memory_space<vmem>>, vector<4x1xf32>
    %c0_14 = arith.constant 0 : index
    %c5 = arith.constant 5 : index
    %19 = vector.load %arg0[%c0_14, %c5] : memref<4x24xf32, #tpu.memory_space<vmem>>, vector<4x1xf32>
    %20 = vector.broadcast %15 : vector<4x1xf32> to vector<4x384xf32>
    %21 = arith.mulf %20, %2 : vector<4x384xf32>
    %22 = vector.broadcast %14 : vector<4x1xf32> to vector<4x384xf32>
    %23 = arith.addf %22, %21 : vector<4x384xf32>
    %24 = vector.broadcast %16 : vector<4x1xf32> to vector<4x384xf32>
    %25 = arith.mulf %24, %8 : vector<4x384xf32>
    %26 = arith.addf %23, %25 : vector<4x384xf32>
    %27 = vector.broadcast %15 : vector<4x1xf32> to vector<4x384xf32>
    %28 = arith.mulf %27, %5 : vector<4x384xf32>
    %29 = vector.broadcast %16 : vector<4x1xf32> to vector<4x384xf32>
    %30 = arith.mulf %29, %11 : vector<4x384xf32>
    %31 = arith.addf %28, %30 : vector<4x384xf32>
    %cst_15 = arith.constant 0.000000e+00 : f32
    %32 = vector.broadcast %cst_15 : f32 to vector<4x384xf32>
    %33 = arith.subf %32, %31 : vector<4x384xf32>
    %34 = vector.broadcast %18 : vector<4x1xf32> to vector<4x384xf32>
    %35 = arith.mulf %34, %2 : vector<4x384xf32>
    %36 = vector.broadcast %17 : vector<4x1xf32> to vector<4x384xf32>
    %37 = arith.addf %36, %35 : vector<4x384xf32>
    %38 = vector.broadcast %19 : vector<4x1xf32> to vector<4x384xf32>
    %39 = arith.mulf %38, %8 : vector<4x384xf32>
    %40 = arith.addf %37, %39 : vector<4x384xf32>
    %41 = vector.broadcast %18 : vector<4x1xf32> to vector<4x384xf32>
    %42 = arith.mulf %41, %5 : vector<4x384xf32>
    %43 = vector.broadcast %19 : vector<4x1xf32> to vector<4x384xf32>
    %44 = arith.mulf %43, %11 : vector<4x384xf32>
    %45 = arith.addf %42, %44 : vector<4x384xf32>
    %cst_16 = arith.constant 0.000000e+00 : f32
    %46 = vector.broadcast %cst_16 : f32 to vector<4x384xf32>
    %47 = arith.subf %46, %45 : vector<4x384xf32>
    %48 = arith.mulf %40, %40 : vector<4x384xf32>
    %49 = arith.mulf %47, %47 : vector<4x384xf32>
    %50 = arith.addf %48, %49 : vector<4x384xf32>
    %51 = tpu.reciprocal %50 {approx = true} : vector<4x384xf32> -> vector<4x384xf32>
    %52 = arith.mulf %50, %51 : vector<4x384xf32>
    %cst_17 = arith.constant 2.000000e+00 : f32
    %53 = vector.broadcast %cst_17 : f32 to vector<4x384xf32>
    %54 = arith.subf %53, %52 : vector<4x384xf32>
    %55 = arith.mulf %51, %54 : vector<4x384xf32>
    %56 = arith.mulf %26, %40 : vector<4x384xf32>
    %57 = arith.mulf %33, %47 : vector<4x384xf32>
    %58 = arith.addf %56, %57 : vector<4x384xf32>
    %59 = arith.mulf %58, %55 : vector<4x384xf32>
    %60 = arith.mulf %33, %40 : vector<4x384xf32>
    %61 = arith.mulf %26, %47 : vector<4x384xf32>
    %62 = arith.subf %60, %61 : vector<4x384xf32>
    %63 = arith.mulf %62, %55 : vector<4x384xf32>
    %64 = arith.mulf %12, %59 : vector<4x384xf32>
    %65 = arith.mulf %13, %63 : vector<4x384xf32>
    %66 = arith.subf %64, %65 : vector<4x384xf32>
    %67 = arith.mulf %12, %63 : vector<4x384xf32>
    %68 = arith.mulf %13, %59 : vector<4x384xf32>
    %69 = arith.addf %67, %68 : vector<4x384xf32>
    %c0_18 = arith.constant 0 : index
    %c6 = arith.constant 6 : index
    %70 = vector.load %arg0[%c0_18, %c6] : memref<4x24xf32, #tpu.memory_space<vmem>>, vector<4x1xf32>
    %c0_19 = arith.constant 0 : index
    %c7 = arith.constant 7 : index
    %71 = vector.load %arg0[%c0_19, %c7] : memref<4x24xf32, #tpu.memory_space<vmem>>, vector<4x1xf32>
    %c0_20 = arith.constant 0 : index
    %c8 = arith.constant 8 : index
    %72 = vector.load %arg0[%c0_20, %c8] : memref<4x24xf32, #tpu.memory_space<vmem>>, vector<4x1xf32>
    %c0_21 = arith.constant 0 : index
    %c9 = arith.constant 9 : index
    %73 = vector.load %arg0[%c0_21, %c9] : memref<4x24xf32, #tpu.memory_space<vmem>>, vector<4x1xf32>
    %c0_22 = arith.constant 0 : index
    %c10 = arith.constant 10 : index
    %74 = vector.load %arg0[%c0_22, %c10] : memref<4x24xf32, #tpu.memory_space<vmem>>, vector<4x1xf32>
    %c0_23 = arith.constant 0 : index
    %c11 = arith.constant 11 : index
    %75 = vector.load %arg0[%c0_23, %c11] : memref<4x24xf32, #tpu.memory_space<vmem>>, vector<4x1xf32>
    %76 = vector.broadcast %71 : vector<4x1xf32> to vector<4x384xf32>
    %77 = arith.mulf %76, %2 : vector<4x384xf32>
    %78 = vector.broadcast %70 : vector<4x1xf32> to vector<4x384xf32>
    %79 = arith.addf %78, %77 : vector<4x384xf32>
    %80 = vector.broadcast %72 : vector<4x1xf32> to vector<4x384xf32>
    %81 = arith.mulf %80, %8 : vector<4x384xf32>
    %82 = arith.addf %79, %81 : vector<4x384xf32>
    %83 = vector.broadcast %71 : vector<4x1xf32> to vector<4x384xf32>
    %84 = arith.mulf %83, %5 : vector<4x384xf32>
    %85 = vector.broadcast %72 : vector<4x1xf32> to vector<4x384xf32>
    %86 = arith.mulf %85, %11 : vector<4x384xf32>
    %87 = arith.addf %84, %86 : vector<4x384xf32>
    %cst_24 = arith.constant 0.000000e+00 : f32
    %88 = vector.broadcast %cst_24 : f32 to vector<4x384xf32>
    %89 = arith.subf %88, %87 : vector<4x384xf32>
    %90 = vector.broadcast %74 : vector<4x1xf32> to vector<4x384xf32>
    %91 = arith.mulf %90, %2 : vector<4x384xf32>
    %92 = vector.broadcast %73 : vector<4x1xf32> to vector<4x384xf32>
    %93 = arith.addf %92, %91 : vector<4x384xf32>
    %94 = vector.broadcast %75 : vector<4x1xf32> to vector<4x384xf32>
    %95 = arith.mulf %94, %8 : vector<4x384xf32>
    %96 = arith.addf %93, %95 : vector<4x384xf32>
    %97 = vector.broadcast %74 : vector<4x1xf32> to vector<4x384xf32>
    %98 = arith.mulf %97, %5 : vector<4x384xf32>
    %99 = vector.broadcast %75 : vector<4x1xf32> to vector<4x384xf32>
    %100 = arith.mulf %99, %11 : vector<4x384xf32>
    %101 = arith.addf %98, %100 : vector<4x384xf32>
    %cst_25 = arith.constant 0.000000e+00 : f32
    %102 = vector.broadcast %cst_25 : f32 to vector<4x384xf32>
    %103 = arith.subf %102, %101 : vector<4x384xf32>
    %104 = arith.mulf %96, %96 : vector<4x384xf32>
    %105 = arith.mulf %103, %103 : vector<4x384xf32>
    %106 = arith.addf %104, %105 : vector<4x384xf32>
    %107 = tpu.reciprocal %106 {approx = true} : vector<4x384xf32> -> vector<4x384xf32>
    %108 = arith.mulf %106, %107 : vector<4x384xf32>
    %cst_26 = arith.constant 2.000000e+00 : f32
    %109 = vector.broadcast %cst_26 : f32 to vector<4x384xf32>
    %110 = arith.subf %109, %108 : vector<4x384xf32>
    %111 = arith.mulf %107, %110 : vector<4x384xf32>
    %112 = arith.mulf %82, %96 : vector<4x384xf32>
    %113 = arith.mulf %89, %103 : vector<4x384xf32>
    %114 = arith.addf %112, %113 : vector<4x384xf32>
    %115 = arith.mulf %114, %111 : vector<4x384xf32>
    %116 = arith.mulf %89, %96 : vector<4x384xf32>
    %117 = arith.mulf %82, %103 : vector<4x384xf32>
    %118 = arith.subf %116, %117 : vector<4x384xf32>
    %119 = arith.mulf %118, %111 : vector<4x384xf32>
    %120 = arith.mulf %66, %115 : vector<4x384xf32>
    %121 = arith.mulf %69, %119 : vector<4x384xf32>
    %122 = arith.subf %120, %121 : vector<4x384xf32>
    %123 = arith.mulf %66, %119 : vector<4x384xf32>
    %124 = arith.mulf %69, %115 : vector<4x384xf32>
    %125 = arith.addf %123, %124 : vector<4x384xf32>
    %c0_27 = arith.constant 0 : index
    %c12 = arith.constant 12 : index
    %126 = vector.load %arg0[%c0_27, %c12] : memref<4x24xf32, #tpu.memory_space<vmem>>, vector<4x1xf32>
    %c0_28 = arith.constant 0 : index
    %c13 = arith.constant 13 : index
    %127 = vector.load %arg0[%c0_28, %c13] : memref<4x24xf32, #tpu.memory_space<vmem>>, vector<4x1xf32>
    %c0_29 = arith.constant 0 : index
    %c14 = arith.constant 14 : index
    %128 = vector.load %arg0[%c0_29, %c14] : memref<4x24xf32, #tpu.memory_space<vmem>>, vector<4x1xf32>
    %c0_30 = arith.constant 0 : index
    %c15 = arith.constant 15 : index
    %129 = vector.load %arg0[%c0_30, %c15] : memref<4x24xf32, #tpu.memory_space<vmem>>, vector<4x1xf32>
    %c0_31 = arith.constant 0 : index
    %c16 = arith.constant 16 : index
    %130 = vector.load %arg0[%c0_31, %c16] : memref<4x24xf32, #tpu.memory_space<vmem>>, vector<4x1xf32>
    %c0_32 = arith.constant 0 : index
    %c17 = arith.constant 17 : index
    %131 = vector.load %arg0[%c0_32, %c17] : memref<4x24xf32, #tpu.memory_space<vmem>>, vector<4x1xf32>
    %132 = vector.broadcast %127 : vector<4x1xf32> to vector<4x384xf32>
    %133 = arith.mulf %132, %2 : vector<4x384xf32>
    %134 = vector.broadcast %126 : vector<4x1xf32> to vector<4x384xf32>
    %135 = arith.addf %134, %133 : vector<4x384xf32>
    %136 = vector.broadcast %128 : vector<4x1xf32> to vector<4x384xf32>
    %137 = arith.mulf %136, %8 : vector<4x384xf32>
    %138 = arith.addf %135, %137 : vector<4x384xf32>
    %139 = vector.broadcast %127 : vector<4x1xf32> to vector<4x384xf32>
    %140 = arith.mulf %139, %5 : vector<4x384xf32>
    %141 = vector.broadcast %128 : vector<4x1xf32> to vector<4x384xf32>
    %142 = arith.mulf %141, %11 : vector<4x384xf32>
    %143 = arith.addf %140, %142 : vector<4x384xf32>
    %cst_33 = arith.constant 0.000000e+00 : f32
    %144 = vector.broadcast %cst_33 : f32 to vector<4x384xf32>
    %145 = arith.subf %144, %143 : vector<4x384xf32>
    %146 = vector.broadcast %130 : vector<4x1xf32> to vector<4x384xf32>
    %147 = arith.mulf %146, %2 : vector<4x384xf32>
    %148 = vector.broadcast %129 : vector<4x1xf32> to vector<4x384xf32>
    %149 = arith.addf %148, %147 : vector<4x384xf32>
    %150 = vector.broadcast %131 : vector<4x1xf32> to vector<4x384xf32>
    %151 = arith.mulf %150, %8 : vector<4x384xf32>
    %152 = arith.addf %149, %151 : vector<4x384xf32>
    %153 = vector.broadcast %130 : vector<4x1xf32> to vector<4x384xf32>
    %154 = arith.mulf %153, %5 : vector<4x384xf32>
    %155 = vector.broadcast %131 : vector<4x1xf32> to vector<4x384xf32>
    %156 = arith.mulf %155, %11 : vector<4x384xf32>
    %157 = arith.addf %154, %156 : vector<4x384xf32>
    %cst_34 = arith.constant 0.000000e+00 : f32
    %158 = vector.broadcast %cst_34 : f32 to vector<4x384xf32>
    %159 = arith.subf %158, %157 : vector<4x384xf32>
    %160 = arith.mulf %152, %152 : vector<4x384xf32>
    %161 = arith.mulf %159, %159 : vector<4x384xf32>
    %162 = arith.addf %160, %161 : vector<4x384xf32>
    %163 = tpu.reciprocal %162 {approx = true} : vector<4x384xf32> -> vector<4x384xf32>
    %164 = arith.mulf %162, %163 : vector<4x384xf32>
    %cst_35 = arith.constant 2.000000e+00 : f32
    %165 = vector.broadcast %cst_35 : f32 to vector<4x384xf32>
    %166 = arith.subf %165, %164 : vector<4x384xf32>
    %167 = arith.mulf %163, %166 : vector<4x384xf32>
    %168 = arith.mulf %138, %152 : vector<4x384xf32>
    %169 = arith.mulf %145, %159 : vector<4x384xf32>
    %170 = arith.addf %168, %169 : vector<4x384xf32>
    %171 = arith.mulf %170, %167 : vector<4x384xf32>
    %172 = arith.mulf %145, %152 : vector<4x384xf32>
    %173 = arith.mulf %138, %159 : vector<4x384xf32>
    %174 = arith.subf %172, %173 : vector<4x384xf32>
    %175 = arith.mulf %174, %167 : vector<4x384xf32>
    %176 = arith.mulf %122, %171 : vector<4x384xf32>
    %177 = arith.mulf %125, %175 : vector<4x384xf32>
    %178 = arith.subf %176, %177 : vector<4x384xf32>
    %179 = arith.mulf %122, %175 : vector<4x384xf32>
    %180 = arith.mulf %125, %171 : vector<4x384xf32>
    %181 = arith.addf %179, %180 : vector<4x384xf32>
    %c0_36 = arith.constant 0 : index
    %c18 = arith.constant 18 : index
    %182 = vector.load %arg0[%c0_36, %c18] : memref<4x24xf32, #tpu.memory_space<vmem>>, vector<4x1xf32>
    %c0_37 = arith.constant 0 : index
    %c19 = arith.constant 19 : index
    %183 = vector.load %arg0[%c0_37, %c19] : memref<4x24xf32, #tpu.memory_space<vmem>>, vector<4x1xf32>
    %c0_38 = arith.constant 0 : index
    %c20 = arith.constant 20 : index
    %184 = vector.load %arg0[%c0_38, %c20] : memref<4x24xf32, #tpu.memory_space<vmem>>, vector<4x1xf32>
    %c0_39 = arith.constant 0 : index
    %c21 = arith.constant 21 : index
    %185 = vector.load %arg0[%c0_39, %c21] : memref<4x24xf32, #tpu.memory_space<vmem>>, vector<4x1xf32>
    %c0_40 = arith.constant 0 : index
    %c22 = arith.constant 22 : index
    %186 = vector.load %arg0[%c0_40, %c22] : memref<4x24xf32, #tpu.memory_space<vmem>>, vector<4x1xf32>
    %c0_41 = arith.constant 0 : index
    %c23 = arith.constant 23 : index
    %187 = vector.load %arg0[%c0_41, %c23] : memref<4x24xf32, #tpu.memory_space<vmem>>, vector<4x1xf32>
    %188 = vector.broadcast %183 : vector<4x1xf32> to vector<4x384xf32>
    %189 = arith.mulf %188, %2 : vector<4x384xf32>
    %190 = vector.broadcast %182 : vector<4x1xf32> to vector<4x384xf32>
    %191 = arith.addf %190, %189 : vector<4x384xf32>
    %192 = vector.broadcast %184 : vector<4x1xf32> to vector<4x384xf32>
    %193 = arith.mulf %192, %8 : vector<4x384xf32>
    %194 = arith.addf %191, %193 : vector<4x384xf32>
    %195 = vector.broadcast %183 : vector<4x1xf32> to vector<4x384xf32>
    %196 = arith.mulf %195, %5 : vector<4x384xf32>
    %197 = vector.broadcast %184 : vector<4x1xf32> to vector<4x384xf32>
    %198 = arith.mulf %197, %11 : vector<4x384xf32>
    %199 = arith.addf %196, %198 : vector<4x384xf32>
    %cst_42 = arith.constant 0.000000e+00 : f32
    %200 = vector.broadcast %cst_42 : f32 to vector<4x384xf32>
    %201 = arith.subf %200, %199 : vector<4x384xf32>
    %202 = vector.broadcast %186 : vector<4x1xf32> to vector<4x384xf32>
    %203 = arith.mulf %202, %2 : vector<4x384xf32>
    %204 = vector.broadcast %185 : vector<4x1xf32> to vector<4x384xf32>
    %205 = arith.addf %204, %203 : vector<4x384xf32>
    %206 = vector.broadcast %187 : vector<4x1xf32> to vector<4x384xf32>
    %207 = arith.mulf %206, %8 : vector<4x384xf32>
    %208 = arith.addf %205, %207 : vector<4x384xf32>
    %209 = vector.broadcast %186 : vector<4x1xf32> to vector<4x384xf32>
    %210 = arith.mulf %209, %5 : vector<4x384xf32>
    %211 = vector.broadcast %187 : vector<4x1xf32> to vector<4x384xf32>
    %212 = arith.mulf %211, %11 : vector<4x384xf32>
    %213 = arith.addf %210, %212 : vector<4x384xf32>
    %cst_43 = arith.constant 0.000000e+00 : f32
    %214 = vector.broadcast %cst_43 : f32 to vector<4x384xf32>
    %215 = arith.subf %214, %213 : vector<4x384xf32>
    %216 = arith.mulf %208, %208 : vector<4x384xf32>
    %217 = arith.mulf %215, %215 : vector<4x384xf32>
    %218 = arith.addf %216, %217 : vector<4x384xf32>
    %219 = tpu.reciprocal %218 {approx = true} : vector<4x384xf32> -> vector<4x384xf32>
    %220 = arith.mulf %218, %219 : vector<4x384xf32>
    %cst_44 = arith.constant 2.000000e+00 : f32
    %221 = vector.broadcast %cst_44 : f32 to vector<4x384xf32>
    %222 = arith.subf %221, %220 : vector<4x384xf32>
    %223 = arith.mulf %219, %222 : vector<4x384xf32>
    %224 = arith.mulf %194, %208 : vector<4x384xf32>
    %225 = arith.mulf %201, %215 : vector<4x384xf32>
    %226 = arith.addf %224, %225 : vector<4x384xf32>
    %227 = arith.mulf %226, %223 : vector<4x384xf32>
    %228 = arith.mulf %201, %208 : vector<4x384xf32>
    %229 = arith.mulf %194, %215 : vector<4x384xf32>
    %230 = arith.subf %228, %229 : vector<4x384xf32>
    %231 = arith.mulf %230, %223 : vector<4x384xf32>
    %232 = arith.mulf %178, %227 : vector<4x384xf32>
    %233 = arith.mulf %181, %231 : vector<4x384xf32>
    %234 = arith.subf %232, %233 : vector<4x384xf32>
    %235 = arith.mulf %178, %231 : vector<4x384xf32>
    %236 = arith.mulf %181, %227 : vector<4x384xf32>
    %237 = arith.addf %235, %236 : vector<4x384xf32>
    %238 = arith.mulf %234, %234 : vector<4x384xf32>
    %239 = arith.mulf %237, %237 : vector<4x384xf32>
    %240 = arith.addf %238, %239 : vector<4x384xf32>
    %241 = math.sqrt %240 : vector<4x384xf32>
    %cst_45 = arith.constant 9.99999993E-9 : f32
    %242 = vector.broadcast %cst_45 : f32 to vector<4x384xf32>
    %243 = arith.addf %241, %242 : vector<4x384xf32>
    %244 = math.log %243 : vector<4x384xf32>
    %c0_46 = arith.constant 0 : index
    %c0_47 = arith.constant 0 : index
    %245 = vector.load %arg4[%c0_46, %c0_47] : memref<4x384xf32, #tpu.memory_space<vmem>>, vector<4x384xf32>
    tpu.vector_store %arg4[%c0_46, %c0_47], %244 {strides = array<i32>} : memref<4x384xf32, #tpu.memory_space<vmem>>, vector<4x384xf32>,
    %246 = math.absf %234 : vector<4x384xf32>
    %247 = math.absf %237 : vector<4x384xf32>
    %248 = arith.maximumf %246, %247 : vector<4x384xf32>
    %249 = arith.minimumf %246, %247 : vector<4x384xf32>
    %cst_48 = arith.constant 0.000000e+00 : f32
    %250 = vector.broadcast %cst_48 : f32 to vector<4x384xf32>
    %251 = arith.cmpf oeq, %248, %250 : vector<4x384xf32>
    %cst_49 = arith.constant 1.000000e+00 : f32
    %252 = vector.broadcast %cst_49 : f32 to vector<4x384xf32>
    %253 = arith.select %251, %252, %248 : vector<4x384xi1>, vector<4x384xf32>
    %254 = tpu.reciprocal %253 {approx = true} : vector<4x384xf32> -> vector<4x384xf32>
    %255 = arith.mulf %253, %254 : vector<4x384xf32>
    %cst_50 = arith.constant 2.000000e+00 : f32
    %256 = vector.broadcast %cst_50 : f32 to vector<4x384xf32>
    %257 = arith.subf %256, %255 : vector<4x384xf32>
    %258 = arith.mulf %254, %257 : vector<4x384xf32>
    %259 = arith.mulf %249, %258 : vector<4x384xf32>
    %260 = arith.mulf %259, %259 : vector<4x384xf32>
    %cst_51 = arith.constant -0.00405405788 : f32
    %261 = vector.broadcast %cst_51 : f32 to vector<4x384xf32>
    %262 = arith.mulf %261, %260 : vector<4x384xf32>
    %cst_52 = arith.constant 0.0218612291 : f32
    %263 = vector.broadcast %cst_52 : f32 to vector<4x384xf32>
    %264 = arith.addf %262, %263 : vector<4x384xf32>
    %265 = arith.mulf %264, %260 : vector<4x384xf32>
    %cst_53 = arith.constant 0.055909887 : f32
    %266 = vector.broadcast %cst_53 : f32 to vector<4x384xf32>
    %267 = arith.subf %265, %266 : vector<4x384xf32>
    %268 = arith.mulf %267, %260 : vector<4x384xf32>
    %cst_54 = arith.constant 0.0964200422 : f32
    %269 = vector.broadcast %cst_54 : f32 to vector<4x384xf32>
    %270 = arith.addf %268, %269 : vector<4x384xf32>
    %271 = arith.mulf %270, %260 : vector<4x384xf32>
    %cst_55 = arith.constant 0.139085338 : f32
    %272 = vector.broadcast %cst_55 : f32 to vector<4x384xf32>
    %273 = arith.subf %271, %272 : vector<4x384xf32>
    %274 = arith.mulf %273, %260 : vector<4x384xf32>
    %cst_56 = arith.constant 0.199465364 : f32
    %275 = vector.broadcast %cst_56 : f32 to vector<4x384xf32>
    %276 = arith.addf %274, %275 : vector<4x384xf32>
    %277 = arith.mulf %276, %260 : vector<4x384xf32>
    %cst_57 = arith.constant 0.333298564 : f32
    %278 = vector.broadcast %cst_57 : f32 to vector<4x384xf32>
    %279 = arith.subf %277, %278 : vector<4x384xf32>
    %280 = arith.mulf %279, %260 : vector<4x384xf32>
    %cst_58 = arith.constant 0.999999344 : f32
    %281 = vector.broadcast %cst_58 : f32 to vector<4x384xf32>
    %282 = arith.addf %280, %281 : vector<4x384xf32>
    %283 = arith.mulf %282, %259 : vector<4x384xf32>
    %284 = arith.cmpf ogt, %247, %246 : vector<4x384xf32>
    %cst_59 = arith.constant 1.57079637 : f32
    %285 = vector.broadcast %cst_59 : f32 to vector<4x384xf32>
    %286 = arith.subf %285, %283 : vector<4x384xf32>
    %287 = arith.select %284, %286, %283 : vector<4x384xi1>, vector<4x384xf32>
    %cst_60 = arith.constant 0.000000e+00 : f32
    %288 = vector.broadcast %cst_60 : f32 to vector<4x384xf32>
    %289 = arith.cmpf olt, %234, %288 : vector<4x384xf32>
    %cst_61 = arith.constant 3.14159274 : f32
    %290 = vector.broadcast %cst_61 : f32 to vector<4x384xf32>
    %291 = arith.subf %290, %287 : vector<4x384xf32>
    %292 = arith.select %289, %291, %287 : vector<4x384xi1>, vector<4x384xf32>
    %cst_62 = arith.constant 0.000000e+00 : f32
    %293 = vector.broadcast %cst_62 : f32 to vector<4x384xf32>
    %294 = arith.cmpf olt, %237, %293 : vector<4x384xf32>
    %cst_63 = arith.constant 0.000000e+00 : f32
    %295 = vector.broadcast %cst_63 : f32 to vector<4x384xf32>
    %296 = arith.subf %295, %292 : vector<4x384xf32>
    %297 = arith.select %294, %296, %292 : vector<4x384xi1>, vector<4x384xf32>
    %c0_64 = arith.constant 0 : index
    %c0_65 = arith.constant 0 : index
    %298 = vector.load %arg5[%c0_64, %c0_65] : memref<4x384xf32, #tpu.memory_space<vmem>>, vector<4x384xf32>
    tpu.vector_store %arg5[%c0_64, %c0_65], %297 {strides = array<i32>} : memref<4x384xf32, #tpu.memory_space<vmem>>, vector<4x384xf32>,
    %c0_66 = arith.constant 0 : index
    %c0_67 = arith.constant 0 : index
    %299 = vector.load %arg4[%c0_66, %c0_67] : memref<4x384xf32, #tpu.memory_space<vmem>>, vector<2x384xf32>
    %c2_68 = arith.constant 2 : index
    %c0_69 = arith.constant 0 : index
    %300 = vector.load %arg4[%c2_68, %c0_69] : memref<4x384xf32, #tpu.memory_space<vmem>>, vector<2x384xf32>
    %301 = arith.subf %299, %300 : vector<2x384xf32>
    %c0_70 = arith.constant 0 : index
    %c0_71 = arith.constant 0 : index
    %302 = vector.load %arg5[%c0_70, %c0_71] : memref<4x384xf32, #tpu.memory_space<vmem>>, vector<2x384xf32>
    %c2_72 = arith.constant 2 : index
    %c0_73 = arith.constant 0 : index
    %303 = vector.load %arg5[%c2_72, %c0_73] : memref<4x384xf32, #tpu.memory_space<vmem>>, vector<2x384xf32>
    %304 = arith.subf %302, %303 : vector<2x384xf32>
    %cst_74 = arith.constant 3.14159274 : f32
    %305 = vector.broadcast %cst_74 : f32 to vector<2x384xf32>
    %306 = arith.addf %304, %305 : vector<2x384xf32>
    %cst_75 = arith.constant 0.159154937 : f32
    %307 = vector.broadcast %cst_75 : f32 to vector<2x384xf32>
    %308 = arith.mulf %306, %307 : vector<2x384xf32>
    %309 = math.floor %308 : vector<2x384xf32>
    %cst_76 = arith.constant 6.28318548 : f32
    %310 = vector.broadcast %cst_76 : f32 to vector<2x384xf32>
    %311 = arith.mulf %310, %309 : vector<2x384xf32>
    %312 = arith.subf %306, %311 : vector<2x384xf32>
    %cst_77 = arith.constant 3.14159274 : f32
    %313 = vector.broadcast %cst_77 : f32 to vector<2x384xf32>
    %314 = arith.subf %312, %313 : vector<2x384xf32>
    %cst_78 = arith.constant 1.000000e+00 : f32
    %315 = vector.broadcast %cst_78 : f32 to vector<2x384xf32>
    %316 = arith.mulf %315, %301 : vector<2x384xf32>
    %317 = arith.mulf %316, %301 : vector<2x384xf32>
    %cst_79 = arith.constant 5.000000e-01 : f32
    %318 = vector.broadcast %cst_79 : f32 to vector<2x384xf32>
    %319 = arith.mulf %318, %314 : vector<2x384xf32>
    %320 = arith.mulf %319, %314 : vector<2x384xf32>
    %321 = arith.addf %317, %320 : vector<2x384xf32>
    %c0_80 = arith.constant 0 : index
    %c0_81 = arith.constant 0 : index
    %322 = vector.load %arg2[%c0_80, %c0_81] : memref<1x384xf32, #tpu.memory_space<vmem>>, vector<1x384xf32>
    %cst_82 = arith.constant 0.000000e+00 : f32
    %323 = vector.broadcast %cst_82 : f32 to vector<1x384xf32>
    %324 = arith.cmpf ogt, %322, %323 : vector<1x384xf32>
    %cst_83 = arith.constant 0.000000e+00 : f32
    %325 = vector.shape_cast %324 : vector<1x384xi1> to vector<1x384xi1>
    %326 = vector.broadcast %325 : vector<1x384xi1> to vector<2x384xi1>
    %327 = vector.broadcast %cst_83 : f32 to vector<2x384xf32>
    %328 = arith.select %326, %321, %327 : vector<2x384xi1>, vector<2x384xf32>
    %cst_84 = arith.constant dense<0.000000e+00> : vector<2xf32>
    %329 = vector.multi_reduction <add>, %328, %cst_84 [1] : vector<2x384xf32> to vector<2xf32>
    %330 = vector.shape_cast %329 : vector<2xf32> to vector<2x1xf32>
    %cst_85 = arith.constant dense<0.000000e+00> : vector<1xf32>
    %331 = vector.multi_reduction <add>, %330, %cst_85 [0] : vector<2x1xf32> to vector<1xf32>
    %332 = vector.shape_cast %331 : vector<1xf32> to vector<1x1xf32>
    %cst_86 = arith.constant 0.00194552529 : f32
    %333 = vector.broadcast %cst_86 : f32 to vector<1x1xf32>
    %334 = arith.mulf %332, %333 : vector<1x1xf32>
    %c0_87 = arith.constant 0 : index
    %c0_88 = arith.constant 0 : index
    %335 = vector.load %arg3[%c0_87, %c0_88] : memref<1x1xf32, #tpu.memory_space<vmem>>, vector<1x1xf32>
    tpu.vector_store %arg3[%c0_87, %c0_88], %334 {strides = array<i32>} : memref<1x1xf32, #tpu.memory_space<vmem>>, vector<1x1xf32>,
    return
  }
}

</mosaic_0001>

<llo_original>
// kernel: tpu_custom_call.1
$region0: #{tpu_custom_call.1}
  #allocation0 [shape = 'u32[]', space=smem, size = 0x4, offset = 0x4, fixed_abs, tag = 'smem constant byte address 0x4 - core index']
  #allocation1 [shape = 'u32[144,128]{1,0:T(1,128)}', space=vmem, size = 0x12000, scoped, tag = 'internal scratch']
  #allocation2 [shape = 'f32[4,384]{1,0:T(4,128)}', space=vmem, size = 0x1800, scoped, tag = 'scratch operand']
  #allocation3 [shape = 'f32[4,384]{1,0:T(4,128)}', space=vmem, size = 0x1800, scoped, tag = 'scratch operand']
  %s0 = inlined_call_operand.hbm [shape: f32[4,24], index: 0, kind: input, shape index: {}]
  %s1 = inlined_call_operand.hbm [shape: f32[4,384], index: 1, kind: input, shape index: {}]
  %s2 = inlined_call_operand.vmem [shape: f32[1,384], index: 2, kind: input, shape index: {}]
  %s3 = inlined_call_operand.hbm [shape: f32[1,1], index: 3, kind: output, shape index: {}]
  %s4 = sld [smem:[#allocation0]]
  $region30: #{tpu_custom_call.1} parent=0
    _
  %s6 = ssub.s32 1, %s4
  %s7 = scalar_select 0, %s6, %s4
  $region1: #{tpu_custom_call.1} parent=0
    #allocation4 [shape = 'u8[2048]{0}', space=vmem, size = 0x800, scoped, tag = 'input window, operand 0, single buffered']
    #allocation5 [shape = 's32[1]{0}', space=sflag, size = 0x4, scoped, tag = 'scoped memory for tpu_custom_call.1']
    #allocation6 [shape = 's32[1]{0}', space=sflag, size = 0x4, scoped, tag = 'scoped memory for tpu_custom_call.1']
    #allocation7 [shape = 'u8[6144]{0}', space=vmem, size = 0x1800, scoped, tag = 'input window, operand 1, single buffered']
    #allocation8 [shape = 's32[1]{0}', space=sflag, size = 0x4, scoped, tag = 'scoped memory for tpu_custom_call.1']
    #allocation9 [shape = 'u8[512]{0}', space=vmem, size = 0x400, scoped, tag = 'output window, operand 0, single buffered']
    %8 = vsyncpa [#allocation5], 0
    %9 = vsyncpa [#allocation8], 0
    %10 = vsyncpa [#allocation6], 0
    // Predicated region
    $region2: #{tpu_custom_call.1} parent=1 // pred_check
      _
    $region3: #{tpu_custom_call.1} parent=1 // pred_check_branch
      %12 = sbr.rel (0) target = $region5
    $region4: #{tpu_custom_call.1} parent=1 // pred_region
      %s14 = ssub.s32 64, 64
      %15 = vsyncadd [#allocation5], %s14
      %s17 = sshll.u32 [#allocation4], 4
      %s18 = int_to_ptr.vmem [resolvable:$true] %s17
      %20 = dma.hbm_to_vmem [thread:$0]  %s0, 64, %s18, [#allocation5]
    $region5: #{tpu_custom_call.1} parent=1 // pred_fallthru
      _
    // Predicated region
    $region6: #{tpu_custom_call.1} parent=1 // pred_check
      _
    $region7: #{tpu_custom_call.1} parent=1 // pred_check_branch
      %22 = sbr.rel (0) target = $region9
    $region8: #{tpu_custom_call.1} parent=1 // pred_region
      %s24 = ssub.s32 192, 192
      %25 = vsyncadd [#allocation8], %s24
      %s27 = sshll.u32 [#allocation7], 4
      %s28 = int_to_ptr.vmem [resolvable:$true] %s27
      %30 = dma.hbm_to_vmem [thread:$0]  %s1, 192, %s28, [#allocation8]
    $region9: #{tpu_custom_call.1} parent=1 // pred_fallthru
      _
    // Predicated region
    $region10: #{tpu_custom_call.1} parent=1 // pred_check
      _
    $region11: #{tpu_custom_call.1} parent=1 // pred_check_branch
      %32 = sbr.rel (0) target = $region13
    $region12: #{tpu_custom_call.1} parent=1 // pred_region
      _
    $region13: #{tpu_custom_call.1} parent=1 // pred_fallthru
      _
    // Predicated region
    $region14: #{tpu_custom_call.1} parent=1 // pred_check
      _
    $region15: #{tpu_custom_call.1} parent=1 // pred_check_branch
      %34 = sbr.rel (0) target = $region17
    $region16: #{tpu_custom_call.1} parent=1 // pred_region
      %35 = dma.done [#allocation5], 64
    $region17: #{tpu_custom_call.1} parent=1 // pred_fallthru
      _
    // Predicated region
    $region18: #{tpu_custom_call.1} parent=1 // pred_check
      _
    $region19: #{tpu_custom_call.1} parent=1 // pred_check_branch
      %37 = sbr.rel (0) target = $region21
    $region20: #{tpu_custom_call.1} parent=1 // pred_region
      %38 = dma.done [#allocation8], 192
    $region21: #{tpu_custom_call.1} parent=1 // pred_fallthru
      _
    %v39 = vld [vmem:[#allocation7] ss:$4 sm:$0x7]
    %v41 = vlaneseq
    %v42 = vshrl.u32 %v41, 7
    %v43 = vsub.s32 0, %v42
    %v44 = vrot.slane %v39, %v43
    %v45 = vlaneseq
    %v46 = vshrl.u32 %v45, 7
    %v47 = vsub.s32 1, %v46
    %v48 = vrot.slane %v39, %v47
    %v49 = vlaneseq
    %v50 = vshrl.u32 %v49, 7
    %v51 = vsub.s32 2, %v50
    %v52 = vrot.slane %v39, %v51
    %s56 = scalar_lea.vmem [#allocation7], 1
    %v57 = vld [vmem:[%s56] ss:$4 sm:$0x7]
    %v59 = vlaneseq
    %v60 = vshrl.u32 %v59, 7
    %v61 = vsub.s32 0, %v60
    %v62 = vrot.slane %v57, %v61
    %v63 = vlaneseq
    %v64 = vshrl.u32 %v63, 7
    %v65 = vsub.s32 1, %v64
    %v66 = vrot.slane %v57, %v65
    %v67 = vlaneseq
    %v68 = vshrl.u32 %v67, 7
    %v69 = vsub.s32 2, %v68
    %v70 = vrot.slane %v57, %v69
    %s74 = scalar_lea.vmem [#allocation7], 2
    %v75 = vld [vmem:[%s74] ss:$4 sm:$0x7]
    %v77 = vlaneseq
    %v78 = vshrl.u32 %v77, 7
    %v79 = vsub.s32 0, %v78
    %v80 = vrot.slane %v75, %v79
    %v81 = vlaneseq
    %v82 = vshrl.u32 %v81, 7
    %v83 = vsub.s32 1, %v82
    %v84 = vrot.slane %v75, %v83
    %v85 = vlaneseq
    %v86 = vshrl.u32 %v85, 7
    %v87 = vsub.s32 2, %v86
    %v88 = vrot.slane %v75, %v87
    %s92 = scalar_lea.vmem [#allocation7], 3
    %v93 = vld [vmem:[%s92] ss:$4 sm:$0x7]
    %v95 = vlaneseq
    %v96 = vshrl.u32 %v95, 7
    %v97 = vsub.s32 0, %v96
    %v98 = vrot.slane %v93, %v97
    %v99 = vlaneseq
    %v100 = vshrl.u32 %v99, 7
    %v101 = vsub.s32 1, %v100
    %v102 = vrot.slane %v93, %v101
    %v103 = vlaneseq
    %v104 = vshrl.u32 %v103, 7
    %v105 = vsub.s32 2, %v104
    %v106 = vrot.slane %v93, %v105
    %v110 = vld [vmem:[#allocation4] sm:$0xf]
    %112 = vset.pattern.permute.xlu0 1
    %113 = vperm.xlu0 %112, %v110
    %v114 = vpop.permute.xlu0 %113
    %v116 = vmul.f32 %v114, %v44
    %v117 = vmul.f32 %v114, %v48
    %v118 = vmul.f32 %v114, %v52
    %119 = vset.pattern.permute.xlu0 0
    %120 = vperm.xlu0 %119, %v110
    %v121 = vpop.permute.xlu0 %120
    %v123 = vadd.f32 %v121, %v116
    %v124 = vadd.f32 %v121, %v117
    %v125 = vadd.f32 %v121, %v118
    %126 = vset.pattern.permute.xlu0 2
    %127 = vperm.xlu0 %126, %v110
    %v128 = vpop.permute.xlu0 %127
    %v130 = vmul.f32 %v128, %v80
    %v131 = vmul.f32 %v128, %v84
    %v132 = vmul.f32 %v128, %v88
    %v133 = vadd.f32 %v123, %v130
    %v134 = vadd.f32 %v124, %v131
    %v135 = vadd.f32 %v125, %v132
    %v136 = vmul.f32 %v114, %v62
    %v137 = vmul.f32 %v114, %v66
    %v138 = vmul.f32 %v114, %v70
    %v139 = vmul.f32 %v128, %v98
    %v140 = vmul.f32 %v128, %v102
    %v141 = vmul.f32 %v128, %v106
    %v142 = vadd.f32 %v136, %v139
    %v143 = vadd.f32 %v137, %v140
    %v144 = vadd.f32 %v138, %v141
    %v145 = vsub.f32 0.0, %v142
    %v146 = vsub.f32 0.0, %v143
    %v147 = vsub.f32 0.0, %v144
    %148 = vset.pattern.permute.xlu0 4
    %149 = vperm.xlu0 %148, %v110
    %v150 = vpop.permute.xlu0 %149
    %v152 = vmul.f32 %v150, %v44
    %v153 = vmul.f32 %v150, %v48
    %v154 = vmul.f32 %v150, %v52
    %155 = vset.pattern.permute.xlu0 3
    %156 = vperm.xlu0 %155, %v110
    %v157 = vpop.permute.xlu0 %156
    %v159 = vadd.f32 %v157, %v152
    %v160 = vadd.f32 %v157, %v153
    %v161 = vadd.f32 %v157, %v154
    %162 = vset.pattern.permute.xlu0 5
    %163 = vperm.xlu0 %162, %v110
    %v164 = vpop.permute.xlu0 %163
    %v166 = vmul.f32 %v164, %v80
    %v167 = vmul.f32 %v164, %v84
    %v168 = vmul.f32 %v164, %v88
    %v169 = vadd.f32 %v159, %v166
    %v170 = vadd.f32 %v160, %v167
    %v171 = vadd.f32 %v161, %v168
    %v172 = vmul.f32 %v150, %v62
    %v173 = vmul.f32 %v150, %v66
    %v174 = vmul.f32 %v150, %v70
    %v175 = vmul.f32 %v164, %v98
    %v176 = vmul.f32 %v164, %v102
    %v177 = vmul.f32 %v164, %v106
    %v178 = vadd.f32 %v172, %v175
    %v179 = vadd.f32 %v173, %v176
    %v180 = vadd.f32 %v174, %v177
    %v181 = vsub.f32 0.0, %v178
    %v182 = vsub.f32 0.0, %v179
    %v183 = vsub.f32 0.0, %v180
    %v184 = vmul.f32 %v169, %v169
    %v185 = vmul.f32 %v170, %v170
    %v186 = vmul.f32 %v171, %v171
    %v187 = vmul.f32 %v181, %v181
    %v188 = vmul.f32 %v182, %v182
    %v189 = vmul.f32 %v183, %v183
    %v190 = vadd.f32 %v184, %v187
    %v191 = vadd.f32 %v185, %v188
    %v192 = vadd.f32 %v186, %v189
    %v193 = vrcp.pop %v190
    %v194 = vrcp.pop %v191
    %v195 = vrcp.pop %v192
    %v196 = vmul.f32 %v190, %v193
    %v197 = vmul.f32 %v191, %v194
    %v198 = vmul.f32 %v192, %v195
    %v199 = vsub.f32 2.0, %v196
    %v200 = vsub.f32 2.0, %v197
    %v201 = vsub.f32 2.0, %v198
    %v202 = vmul.f32 %v193, %v199
    %v203 = vmul.f32 %v194, %v200
    %v204 = vmul.f32 %v195, %v201
    %v205 = vmul.f32 %v133, %v169
    %v206 = vmul.f32 %v134, %v170
    %v207 = vmul.f32 %v135, %v171
    %v208 = vmul.f32 %v145, %v181
    %v209 = vmul.f32 %v146, %v182
    %v210 = vmul.f32 %v147, %v183
    %v211 = vadd.f32 %v205, %v208
    %v212 = vadd.f32 %v206, %v209
    %v213 = vadd.f32 %v207, %v210
    %v214 = vmul.f32 %v211, %v202
    %v215 = vmul.f32 %v212, %v203
    %v216 = vmul.f32 %v213, %v204
    %v217 = vmul.f32 %v145, %v169
    %v218 = vmul.f32 %v146, %v170
    %v219 = vmul.f32 %v147, %v171
    %v220 = vmul.f32 %v133, %v181
    %v221 = vmul.f32 %v134, %v182
    %v222 = vmul.f32 %v135, %v183
    %v223 = vsub.f32 %v217, %v220
    %v224 = vsub.f32 %v218, %v221
    %v225 = vsub.f32 %v219, %v222
    %v226 = vmul.f32 %v223, %v202
    %v227 = vmul.f32 %v224, %v203
    %v228 = vmul.f32 %v225, %v204
    %v229 = vmul.f32 %v226, 0.0
    %v230 = vmul.f32 %v227, 0.0
    %v231 = vmul.f32 %v228, 0.0
    %v232 = vsub.f32 %v214, %v229
    %v233 = vsub.f32 %v215, %v230
    %v234 = vsub.f32 %v216, %v231
    %v235 = vmul.f32 %v214, 0.0
    %v236 = vmul.f32 %v215, 0.0
    %v237 = vmul.f32 %v216, 0.0
    %v238 = vadd.f32 %v226, %v235
    %v239 = vadd.f32 %v227, %v236
    %v240 = vadd.f32 %v228, %v237
    %241 = vset.pattern.permute.xlu0 7
    %242 = vperm.xlu0 %241, %v110
    %v243 = vpop.permute.xlu0 %242
    %v245 = vmul.f32 %v243, %v44
    %v246 = vmul.f32 %v243, %v48
    %v247 = vmul.f32 %v243, %v52
    %248 = vset.pattern.permute.xlu0 6
    %249 = vperm.xlu0 %248, %v110
    %v250 = vpop.permute.xlu0 %249
    %v252 = vadd.f32 %v250, %v245
    %v253 = vadd.f32 %v250, %v246
    %v254 = vadd.f32 %v250, %v247
    %255 = vset.pattern.permute.xlu0 8
    %256 = vperm.xlu0 %255, %v110
    %v257 = vpop.permute.xlu0 %256
    %v259 = vmul.f32 %v257, %v80
    %v260 = vmul.f32 %v257, %v84
    %v261 = vmul.f32 %v257, %v88
    %v262 = vadd.f32 %v252, %v259
    %v263 = vadd.f32 %v253, %v260
    %v264 = vadd.f32 %v254, %v261
    %v265 = vmul.f32 %v243, %v62
    %v266 = vmul.f32 %v243, %v66
    %v267 = vmul.f32 %v243, %v70
    %v268 = vmul.f32 %v257, %v98
    %v269 = vmul.f32 %v257, %v102
    %v270 = vmul.f32 %v257, %v106
    %v271 = vadd.f32 %v265, %v268
    %v272 = vadd.f32 %v266, %v269
    %v273 = vadd.f32 %v267, %v270
    %v274 = vsub.f32 0.0, %v271
    %v275 = vsub.f32 0.0, %v272
    %v276 = vsub.f32 0.0, %v273
    %277 = vset.pattern.permute.xlu0 10
    %278 = vperm.xlu0 %277, %v110
    %v279 = vpop.permute.xlu0 %278
    %v281 = vmul.f32 %v279, %v44
    %v282 = vmul.f32 %v279, %v48
    %v283 = vmul.f32 %v279, %v52
    %284 = vset.pattern.permute.xlu0 9
    %285 = vperm.xlu0 %284, %v110
    %v286 = vpop.permute.xlu0 %285
    %v288 = vadd.f32 %v286, %v281
    %v289 = vadd.f32 %v286, %v282
    %v290 = vadd.f32 %v286, %v283
    %291 = vset.pattern.permute.xlu0 11
    %292 = vperm.xlu0 %291, %v110
    %v293 = vpop.permute.xlu0 %292
    %v295 = vmul.f32 %v293, %v80
    %v296 = vmul.f32 %v293, %v84
    %v297 = vmul.f32 %v293, %v88
    %v298 = vadd.f32 %v288, %v295
    %v299 = vadd.f32 %v289, %v296
    %v300 = vadd.f32 %v290, %v297
    %v301 = vmul.f32 %v279, %v62
    %v302 = vmul.f32 %v279, %v66
    %v303 = vmul.f32 %v279, %v70
    %v304 = vmul.f32 %v293, %v98
    %v305 = vmul.f32 %v293, %v102
    %v306 = vmul.f32 %v293, %v106
    %v307 = vadd.f32 %v301, %v304
    %v308 = vadd.f32 %v302, %v305
    %v309 = vadd.f32 %v303, %v306
    %v310 = vsub.f32 0.0, %v307
    %v311 = vsub.f32 0.0, %v308
    %v312 = vsub.f32 0.0, %v309
    %v313 = vmul.f32 %v298, %v298
    %v314 = vmul.f32 %v299, %v299
    %v315 = vmul.f32 %v300, %v300
    %v316 = vmul.f32 %v310, %v310
    %v317 = vmul.f32 %v311, %v311
    %v318 = vmul.f32 %v312, %v312
    %v319 = vadd.f32 %v313, %v316
    %v320 = vadd.f32 %v314, %v317
    %v321 = vadd.f32 %v315, %v318
    %v322 = vrcp.pop %v319
    %v323 = vrcp.pop %v320
    %v324 = vrcp.pop %v321
    %v325 = vmul.f32 %v319, %v322
    %v326 = vmul.f32 %v320, %v323
    %v327 = vmul.f32 %v321, %v324
    %v328 = vsub.f32 2.0, %v325
    %v329 = vsub.f32 2.0, %v326
    %v330 = vsub.f32 2.0, %v327
    %v331 = vmul.f32 %v322, %v328
    %v332 = vmul.f32 %v323, %v329
    %v333 = vmul.f32 %v324, %v330
    %v334 = vmul.f32 %v262, %v298
    %v335 = vmul.f32 %v263, %v299
    %v336 = vmul.f32 %v264, %v300
    %v337 = vmul.f32 %v274, %v310
    %v338 = vmul.f32 %v275, %v311
    %v339 = vmul.f32 %v276, %v312
    %v340 = vadd.f32 %v334, %v337
    %v341 = vadd.f32 %v335, %v338
    %v342 = vadd.f32 %v336, %v339
    %v343 = vmul.f32 %v340, %v331
    %v344 = vmul.f32 %v341, %v332
    %v345 = vmul.f32 %v342, %v333
    %v346 = vmul.f32 %v274, %v298
    %v347 = vmul.f32 %v275, %v299
    %v348 = vmul.f32 %v276, %v300
    %v349 = vmul.f32 %v262, %v310
    %v350 = vmul.f32 %v263, %v311
    %v351 = vmul.f32 %v264, %v312
    %v352 = vsub.f32 %v346, %v349
    %v353 = vsub.f32 %v347, %v350
    %v354 = vsub.f32 %v348, %v351
    %v355 = vmul.f32 %v352, %v331
    %v356 = vmul.f32 %v353, %v332
    %v357 = vmul.f32 %v354, %v333
    %v358 = vmul.f32 %v232, %v343
    %v359 = vmul.f32 %v233, %v344
    %v360 = vmul.f32 %v234, %v345
    %v361 = vmul.f32 %v238, %v355
    %v362 = vmul.f32 %v239, %v356
    %v363 = vmul.f32 %v240, %v357
    %v364 = vsub.f32 %v358, %v361
    %v365 = vsub.f32 %v359, %v362
    %v366 = vsub.f32 %v360, %v363
    %v367 = vmul.f32 %v232, %v355
    %v368 = vmul.f32 %v233, %v356
    %v369 = vmul.f32 %v234, %v357
    %v370 = vmul.f32 %v238, %v343
    %v371 = vmul.f32 %v239, %v344
    %v372 = vmul.f32 %v240, %v345
    %v373 = vadd.f32 %v367, %v370
    %v374 = vadd.f32 %v368, %v371
    %v375 = vadd.f32 %v369, %v372
    %376 = vset.pattern.permute.xlu0 13
    %377 = vperm.xlu0 %376, %v110
    %v378 = vpop.permute.xlu0 %377
    %v380 = vmul.f32 %v378, %v44
    %v381 = vmul.f32 %v378, %v48
    %v382 = vmul.f32 %v378, %v52
    %383 = vset.pattern.permute.xlu0 12
    %384 = vperm.xlu0 %383, %v110
    %v385 = vpop.permute.xlu0 %384
    %v387 = vadd.f32 %v385, %v380
    %v388 = vadd.f32 %v385, %v381
    %v389 = vadd.f32 %v385, %v382
    %390 = vset.pattern.permute.xlu0 14
    %391 = vperm.xlu0 %390, %v110
    %v392 = vpop.permute.xlu0 %391
    %v394 = vmul.f32 %v392, %v80
    %v395 = vmul.f32 %v392, %v84
    %v396 = vmul.f32 %v392, %v88
    %v397 = vadd.f32 %v387, %v394
    %v398 = vadd.f32 %v388, %v395
    %v399 = vadd.f32 %v389, %v396
    %v400 = vmul.f32 %v378, %v62
    %v401 = vmul.f32 %v378, %v66
    %v402 = vmul.f32 %v378, %v70
    %v403 = vmul.f32 %v392, %v98
    %v404 = vmul.f32 %v392, %v102
    %v405 = vmul.f32 %v392, %v106
    %v406 = vadd.f32 %v400, %v403
    %v407 = vadd.f32 %v401, %v404
    %v408 = vadd.f32 %v402, %v405
    %v409 = vsub.f32 0.0, %v406
    %v410 = vsub.f32 0.0, %v407
    %v411 = vsub.f32 0.0, %v408
    %412 = vset.pattern.permute.xlu0 16
    %413 = vperm.xlu0 %412, %v110
    %v414 = vpop.permute.xlu0 %413
    %v416 = vmul.f32 %v414, %v44
    %v417 = vmul.f32 %v414, %v48
    %v418 = vmul.f32 %v414, %v52
    %419 = vset.pattern.permute.xlu0 15
    %420 = vperm.xlu0 %419, %v110
    %v421 = vpop.permute.xlu0 %420
    %v423 = vadd.f32 %v421, %v416
    %v424 = vadd.f32 %v421, %v417
    %v425 = vadd.f32 %v421, %v418
    %426 = vset.pattern.permute.xlu0 17
    %427 = vperm.xlu0 %426, %v110
    %v428 = vpop.permute.xlu0 %427
    %v430 = vmul.f32 %v428, %v80
    %v431 = vmul.f32 %v428, %v84
    %v432 = vmul.f32 %v428, %v88
    %v433 = vadd.f32 %v423, %v430
    %v434 = vadd.f32 %v424, %v431
    %v435 = vadd.f32 %v425, %v432
    %v436 = vmul.f32 %v414, %v62
    %v437 = vmul.f32 %v414, %v66
    %v438 = vmul.f32 %v414, %v70
    %v439 = vmul.f32 %v428, %v98
    %v440 = vmul.f32 %v428, %v102
    %v441 = vmul.f32 %v428, %v106
    %v442 = vadd.f32 %v436, %v439
    %v443 = vadd.f32 %v437, %v440
    %v444 = vadd.f32 %v438, %v441
    %v445 = vsub.f32 0.0, %v442
    %v446 = vsub.f32 0.0, %v443
    %v447 = vsub.f32 0.0, %v444
    %v448 = vmul.f32 %v433, %v433
    %v449 = vmul.f32 %v434, %v434
    %v450 = vmul.f32 %v435, %v435
    %v451 = vmul.f32 %v445, %v445
    %v452 = vmul.f32 %v446, %v446
    %v453 = vmul.f32 %v447, %v447
    %v454 = vadd.f32 %v448, %v451
    %v455 = vadd.f32 %v449, %v452
    %v456 = vadd.f32 %v450, %v453
    %v457 = vrcp.pop %v454
    %v458 = vrcp.pop %v455
    %v459 = vrcp.pop %v456
    %v460 = vmul.f32 %v454, %v457
    %v461 = vmul.f32 %v455, %v458
    %v462 = vmul.f32 %v456, %v459
    %v463 = vsub.f32 2.0, %v460
    %v464 = vsub.f32 2.0, %v461
    %v465 = vsub.f32 2.0, %v462
    %v466 = vmul.f32 %v457, %v463
    %v467 = vmul.f32 %v458, %v464
    %v468 = vmul.f32 %v459, %v465
    %v469 = vmul.f32 %v397, %v433
    %v470 = vmul.f32 %v398, %v434
    %v471 = vmul.f32 %v399, %v435
    %v472 = vmul.f32 %v409, %v445
    %v473 = vmul.f32 %v410, %v446
    %v474 = vmul.f32 %v411, %v447
    %v475 = vadd.f32 %v469, %v472
    %v476 = vadd.f32 %v470, %v473
    %v477 = vadd.f32 %v471, %v474
    %v478 = vmul.f32 %v475, %v466
    %v479 = vmul.f32 %v476, %v467
    %v480 = vmul.f32 %v477, %v468
    %v481 = vmul.f32 %v409, %v433
    %v482 = vmul.f32 %v410, %v434
    %v483 = vmul.f32 %v411, %v435
    %v484 = vmul.f32 %v397, %v445
    %v485 = vmul.f32 %v398, %v446
    %v486 = vmul.f32 %v399, %v447
    %v487 = vsub.f32 %v481, %v484
    %v488 = vsub.f32 %v482, %v485
    %v489 = vsub.f32 %v483, %v486
    %v490 = vmul.f32 %v487, %v466
    %v491 = vmul.f32 %v488, %v467
    %v492 = vmul.f32 %v489, %v468
    %v493 = vmul.f32 %v364, %v478
    %v494 = vmul.f32 %v365, %v479
    %v495 = vmul.f32 %v366, %v480
    %v496 = vmul.f32 %v373, %v490
    %v497 = vmul.f32 %v374, %v491
    %v498 = vmul.f32 %v375, %v492
    %v499 = vsub.f32 %v493, %v496
    %v500 = vsub.f32 %v494, %v497
    %v501 = vsub.f32 %v495, %v498
    %v502 = vmul.f32 %v364, %v490
    %v503 = vmul.f32 %v365, %v491
    %v504 = vmul.f32 %v366, %v492
    %v505 = vmul.f32 %v373, %v478
    %v506 = vmul.f32 %v374, %v479
    %v507 = vmul.f32 %v375, %v480
    %v508 = vadd.f32 %v502, %v505
    %v509 = vadd.f32 %v503, %v506
    %v510 = vadd.f32 %v504, %v507
    %511 = vset.pattern.permute.xlu0 19
    %512 = vperm.xlu0 %511, %v110
    %v513 = vpop.permute.xlu0 %512
    %v515 = vmul.f32 %v513, %v44
    %v516 = vmul.f32 %v513, %v48
    %v517 = vmul.f32 %v513, %v52
    %518 = vset.pattern.permute.xlu0 18
    %519 = vperm.xlu0 %518, %v110
    %v520 = vpop.permute.xlu0 %519
    %v522 = vadd.f32 %v520, %v515
    %v523 = vadd.f32 %v520, %v516
    %v524 = vadd.f32 %v520, %v517
    %525 = vset.pattern.permute.xlu0 20
    %526 = vperm.xlu0 %525, %v110
    %v527 = vpop.permute.xlu0 %526
    %v529 = vmul.f32 %v527, %v80
    %v530 = vmul.f32 %v527, %v84
    %v531 = vmul.f32 %v527, %v88
    %v532 = vadd.f32 %v522, %v529
    %v533 = vadd.f32 %v523, %v530
    %v534 = vadd.f32 %v524, %v531
    %v535 = vmul.f32 %v513, %v62
    %v536 = vmul.f32 %v513, %v66
    %v537 = vmul.f32 %v513, %v70
    %v538 = vmul.f32 %v527, %v98
    %v539 = vmul.f32 %v527, %v102
    %v540 = vmul.f32 %v527, %v106
    %v541 = vadd.f32 %v535, %v538
    %v542 = vadd.f32 %v536, %v539
    %v543 = vadd.f32 %v537, %v540
    %v544 = vsub.f32 0.0, %v541
    %v545 = vsub.f32 0.0, %v542
    %v546 = vsub.f32 0.0, %v543
    %547 = vset.pattern.permute.xlu0 22
    %548 = vperm.xlu0 %547, %v110
    %v549 = vpop.permute.xlu0 %548
    %v551 = vmul.f32 %v549, %v44
    %v552 = vmul.f32 %v549, %v48
    %v553 = vmul.f32 %v549, %v52
    %554 = vset.pattern.permute.xlu0 21
    %555 = vperm.xlu0 %554, %v110
    %v556 = vpop.permute.xlu0 %555
    %v558 = vadd.f32 %v556, %v551
    %v559 = vadd.f32 %v556, %v552
    %v560 = vadd.f32 %v556, %v553
    %561 = vset.pattern.permute.xlu0 23
    %562 = vperm.xlu0 %561, %v110
    %v563 = vpop.permute.xlu0 %562
    %v565 = vmul.f32 %v563, %v80
    %v566 = vmul.f32 %v563, %v84
    %v567 = vmul.f32 %v563, %v88
    %v568 = vadd.f32 %v558, %v565
    %v569 = vadd.f32 %v559, %v566
    %v570 = vadd.f32 %v560, %v567
    %v571 = vmul.f32 %v549, %v62
    %v572 = vmul.f32 %v549, %v66
    %v573 = vmul.f32 %v549, %v70
    %v574 = vmul.f32 %v563, %v98
    %v575 = vmul.f32 %v563, %v102
    %v576 = vmul.f32 %v563, %v106
    %v577 = vadd.f32 %v571, %v574
    %v578 = vadd.f32 %v572, %v575
    %v579 = vadd.f32 %v573, %v576
    %v580 = vsub.f32 0.0, %v577
    %v581 = vsub.f32 0.0, %v578
    %v582 = vsub.f32 0.0, %v579
    %v583 = vmul.f32 %v568, %v568
    %v584 = vmul.f32 %v569, %v569
    %v585 = vmul.f32 %v570, %v570
    %v586 = vmul.f32 %v580, %v580
    %v587 = vmul.f32 %v581, %v581
    %v588 = vmul.f32 %v582, %v582
    %v589 = vadd.f32 %v583, %v586
    %v590 = vadd.f32 %v584, %v587
    %v591 = vadd.f32 %v585, %v588
    %v592 = vrcp.pop %v589
    %v593 = vrcp.pop %v590
    %v594 = vrcp.pop %v591
    %v595 = vmul.f32 %v589, %v592
    %v596 = vmul.f32 %v590, %v593
    %v597 = vmul.f32 %v591, %v594
    %v598 = vsub.f32 2.0, %v595
    %v599 = vsub.f32 2.0, %v596
    %v600 = vsub.f32 2.0, %v597
    %v601 = vmul.f32 %v592, %v598
    %v602 = vmul.f32 %v593, %v599
    %v603 = vmul.f32 %v594, %v600
    %v604 = vmul.f32 %v532, %v568
    %v605 = vmul.f32 %v533, %v569
    %v606 = vmul.f32 %v534, %v570
    %v607 = vmul.f32 %v544, %v580
    %v608 = vmul.f32 %v545, %v581
    %v609 = vmul.f32 %v546, %v582
    %v610 = vadd.f32 %v604, %v607
    %v611 = vadd.f32 %v605, %v608
    %v612 = vadd.f32 %v606, %v609
    %v613 = vmul.f32 %v610, %v601
    %v614 = vmul.f32 %v611, %v602
    %v615 = vmul.f32 %v612, %v603
    %v616 = vmul.f32 %v544, %v568
    %v617 = vmul.f32 %v545, %v569
    %v618 = vmul.f32 %v546, %v570
    %v619 = vmul.f32 %v532, %v580
    %v620 = vmul.f32 %v533, %v581
    %v621 = vmul.f32 %v534, %v582
    %v622 = vsub.f32 %v616, %v619
    %v623 = vsub.f32 %v617, %v620
    %v624 = vsub.f32 %v618, %v621
    %v625 = vmul.f32 %v622, %v601
    %v626 = vmul.f32 %v623, %v602
    %v627 = vmul.f32 %v624, %v603
    %v628 = vmul.f32 %v499, %v613
    %v629 = vmul.f32 %v500, %v614
    %v630 = vmul.f32 %v501, %v615
    %v631 = vmul.f32 %v508, %v625
    %v632 = vmul.f32 %v509, %v626
    %v633 = vmul.f32 %v510, %v627
    %v634 = vsub.f32 %v628, %v631
    %v635 = vsub.f32 %v629, %v632
    %v636 = vsub.f32 %v630, %v633
    %v637 = vmul.f32 %v499, %v625
    %v638 = vmul.f32 %v500, %v626
    %v639 = vmul.f32 %v501, %v627
    %v640 = vmul.f32 %v508, %v613
    %v641 = vmul.f32 %v509, %v614
    %v642 = vmul.f32 %v510, %v615
    %v643 = vadd.f32 %v637, %v640
    %v644 = vadd.f32 %v638, %v641
    %v645 = vadd.f32 %v639, %v642
    %v646 = vmul.f32 %v634, %v634
    %v647 = vmul.f32 %v635, %v635
    %v648 = vmul.f32 %v636, %v636
    %v649 = vmul.f32 %v643, %v643
    %v650 = vmul.f32 %v644, %v644
    %v651 = vmul.f32 %v645, %v645
    %v652 = vadd.f32 %v646, %v649
    %v653 = vadd.f32 %v647, %v650
    %v654 = vadd.f32 %v648, %v651
    %v655 = vrsqrt.pop %v652
    %v656 = vmul.f32 %v652, %v655
    %vm657 = vcmp.eq.f32.partialorder %v652, inf
    %v658 = vsel %vm657, %v652, %v656
    %vm659 = vcmp.eq.f32.partialorder %v652, 0.0
    %v660 = vand.u32 %v652, 2147483648
    %v661 = vsel %vm659, %v660, %v658
    %v662 = vrsqrt.pop %v653
    %v663 = vmul.f32 %v653, %v662
    %vm664 = vcmp.eq.f32.partialorder %v653, inf
    %v665 = vsel %vm664, %v653, %v663
    %vm666 = vcmp.eq.f32.partialorder %v653, 0.0
    %v667 = vand.u32 %v653, 2147483648
    %v668 = vsel %vm666, %v667, %v665
    %v669 = vrsqrt.pop %v654
    %v670 = vmul.f32 %v654, %v669
    %vm671 = vcmp.eq.f32.partialorder %v654, inf
    %v672 = vsel %vm671, %v654, %v670
    %vm673 = vcmp.eq.f32.partialorder %v654, 0.0
    %v674 = vand.u32 %v654, 2147483648
    %v675 = vsel %vm673, %v674, %v672
    %v676 = vadd.f32 %v661, 1e-08
    %v677 = vadd.f32 %v668, 1e-08
    %v678 = vadd.f32 %v675, 1e-08
    %v679 = vlog2.pop %v676
    %v680 = vmul.f32 %v679, 0.6931472
    %v681 = vlog2.pop %v677
    %v682 = vmul.f32 %v681, 0.6931472
    %v683 = vlog2.pop %v678
    %v684 = vmul.f32 %v683, 0.6931472
    %v687 = vcombine.low %v680, %v682
    %689 = vst [vmem:[#allocation2] sm:$0xff] %v687
    %690 = vst [vmem:[#allocation2 + $0x8] sm:$0xf] %v684
    %v691 = vand.u32 2147483647, %v634
    %v692 = vand.u32 2147483647, %v635
    %v693 = vand.u32 2147483647, %v636
    %v694 = vand.u32 2147483647, %v643
    %v695 = vand.u32 2147483647, %v644
    %v696 = vand.u32 2147483647, %v645
    %v697 = vmax.f32 %v691, %v694
    %v698 = vmax.f32 %v692, %v695
    %v699 = vmax.f32 %v693, %v696
    %v700 = vmin.f32 %v691, %v694
    %v701 = vmin.f32 %v692, %v695
    %v702 = vmin.f32 %v693, %v696
    %vm703 = vcmp.eq.f32.partialorder %v697, 0.0
    %vm704 = vcmp.eq.f32.partialorder %v698, 0.0
    %vm705 = vcmp.eq.f32.partialorder %v699, 0.0
    %v706 = vsel %vm703, 1.0, %v697
    %v707 = vsel %vm704, 1.0, %v698
    %v708 = vsel %vm705, 1.0, %v699
    %v709 = vrcp.pop %v706
    %v710 = vrcp.pop %v707
    %v711 = vrcp.pop %v708
    %v712 = vmul.f32 %v706, %v709
    %v713 = vmul.f32 %v707, %v710
    %v714 = vmul.f32 %v708, %v711
    %v715 = vsub.f32 2.0, %v712
    %v716 = vsub.f32 2.0, %v713
    %v717 = vsub.f32 2.0, %v714
    %v718 = vmul.f32 %v709, %v715
    %v719 = vmul.f32 %v710, %v716
    %v720 = vmul.f32 %v711, %v717
    %v721 = vmul.f32 %v700, %v718
    %v722 = vmul.f32 %v701, %v719
    %v723 = vmul.f32 %v702, %v720
    %v724 = vmul.f32 %v721, %v721
    %v725 = vmul.f32 %v722, %v722
    %v726 = vmul.f32 %v723, %v723
    %v727 = vmul.f32 %v724, -0.004054058
    %v728 = vmul.f32 %v725, -0.004054058
    %v729 = vmul.f32 %v726, -0.004054058
    %v730 = vadd.f32 %v727, 0.02186123
    %v731 = vadd.f32 %v728, 0.02186123
    %v732 = vadd.f32 %v729, 0.02186123
    %v733 = vmul.f32 %v730, %v724
    %v734 = vmul.f32 %v731, %v725
    %v735 = vmul.f32 %v732, %v726
    %v736 = vsub.f32 %v733, 0.055909887
    %v737 = vsub.f32 %v734, 0.055909887
    %v738 = vsub.f32 %v735, 0.055909887
    %v739 = vmul.f32 %v736, %v724
    %v740 = vmul.f32 %v737, %v725
    %v741 = vmul.f32 %v738, %v726
    %v742 = vadd.f32 %v739, 0.09642004
    %v743 = vadd.f32 %v740, 0.09642004
    %v744 = vadd.f32 %v741, 0.09642004
    %v745 = vmul.f32 %v742, %v724
    %v746 = vmul.f32 %v743, %v725
    %v747 = vmul.f32 %v744, %v726
    %v748 = vsub.f32 %v745, 0.13908534
    %v749 = vsub.f32 %v746, 0.13908534
    %v750 = vsub.f32 %v747, 0.13908534
    %v751 = vmul.f32 %v748, %v724
    %v752 = vmul.f32 %v749, %v725
    %v753 = vmul.f32 %v750, %v726
    %v754 = vadd.f32 %v751, 0.19946536
    %v755 = vadd.f32 %v752, 0.19946536
    %v756 = vadd.f32 %v753, 0.19946536
    %v757 = vmul.f32 %v754, %v724
    %v758 = vmul.f32 %v755, %v725
    %v759 = vmul.f32 %v756, %v726
    %v760 = vsub.f32 %v757, 0.33329856
    %v761 = vsub.f32 %v758, 0.33329856
    %v762 = vsub.f32 %v759, 0.33329856
    %v763 = vmul.f32 %v760, %v724
    %v764 = vmul.f32 %v761, %v725
    %v765 = vmul.f32 %v762, %v726
    %v766 = vadd.f32 %v763, 0.99999934
    %v767 = vadd.f32 %v764, 0.99999934
    %v768 = vadd.f32 %v765, 0.99999934
    %v769 = vmul.f32 %v766, %v721
    %v770 = vmul.f32 %v767, %v722
    %v771 = vmul.f32 %v768, %v723
    %vm772 = vcmp.gt.f32.partialorder %v694, %v691
    %vm773 = vcmp.gt.f32.partialorder %v695, %v692
    %vm774 = vcmp.gt.f32.partialorder %v696, %v693
    %v775 = vsub.f32 1.5707964, %v769
    %v776 = vsub.f32 1.5707964, %v770
    %v777 = vsub.f32 1.5707964, %v771
    %v778 = vsel %vm772, %v775, %v769
    %v779 = vsel %vm773, %v776, %v770
    %v780 = vsel %vm774, %v777, %v771
    %vm781 = vcmp.lt.f32.partialorder %v634, 0.0
    %vm782 = vcmp.lt.f32.partialorder %v635, 0.0
    %vm783 = vcmp.lt.f32.partialorder %v636, 0.0
    %v784 = vsub.f32 3.1415927, %v778
    %v785 = vsub.f32 3.1415927, %v779
    %v786 = vsub.f32 3.1415927, %v780
    %v787 = vsel %vm781, %v784, %v778
    %v788 = vsel %vm782, %v785, %v779
    %v789 = vsel %vm783, %v786, %v780
    %vm790 = vcmp.lt.f32.partialorder %v643, 0.0
    %vm791 = vcmp.lt.f32.partialorder %v644, 0.0
    %vm792 = vcmp.lt.f32.partialorder %v645, 0.0
    %v793 = vsub.f32 0.0, %v787
    %v794 = vsub.f32 0.0, %v788
    %v795 = vsub.f32 0.0, %v789
    %v796 = vsel %vm790, %v793, %v787
    %v797 = vsel %vm791, %v794, %v788
    %v798 = vsel %vm792, %v795, %v789
    %v801 = vcombine.low %v796, %v797
    %803 = vst [vmem:[#allocation3] sm:$0xff] %v801
    %804 = vst [vmem:[#allocation3 + $0x8] sm:$0xf] %v798
    %v805 = vld [vmem:[#allocation2] sm:$0x33]
    %v806 = vld [vmem:[#allocation2 + $0x8] sm:$0x3]
    %v807 = vld [vmem:[#allocation2] sm:$0xcc]
    %v808 = vld [vmem:[#allocation2 + $0x8] sm:$0xc]
    %v811 = vrot.slane %v807, 6
    %v812 = vrot.slane %v811, 4
    %v813 = vrot.slane %v808, 6
    %v814 = vrot.slane %v813, 4
    %v817 = vsub.f32 %v805, %v812
    %v818 = vsub.f32 %v806, %v814
    %v819 = vld [vmem:[#allocation3] sm:$0x33]
    %v820 = vld [vmem:[#allocation3 + $0x8] sm:$0x3]
    %v821 = vld [vmem:[#allocation3] sm:$0xcc]
    %v822 = vld [vmem:[#allocation3 + $0x8] sm:$0xc]
    %v825 = vrot.slane %v821, 6
    %v826 = vrot.slane %v825, 4
    %v827 = vrot.slane %v822, 6
    %v828 = vrot.slane %v827, 4
    %v831 = vsub.f32 %v819, %v826
    %v832 = vsub.f32 %v820, %v828
    %v833 = vadd.f32 %v831, 3.1415927
    %v834 = vadd.f32 %v832, 3.1415927
    %v835 = vmul.f32 %v833, 0.15915494
    %v836 = vmul.f32 %v834, 0.15915494
    %v837 = vfloor.f32 %v835
    %v838 = vfloor.f32 %v836
    %v839 = vmul.f32 %v837, 6.2831855
    %v840 = vmul.f32 %v838, 6.2831855
    %v841 = vsub.f32 %v833, %v839
    %v842 = vsub.f32 %v834, %v840
    %v843 = vsub.f32 %v841, 3.1415927
    %v844 = vsub.f32 %v842, 3.1415927
    %v845 = vmul.f32 %v817, %v817
    %v846 = vmul.f32 %v818, %v818
    %v847 = vmul.f32 %v843, 0.5
    %v848 = vmul.f32 %v844, 0.5
    %v849 = vmul.f32 %v847, %v843
    %v850 = vmul.f32 %v848, %v844
    %v851 = vadd.f32 %v845, %v849
    %v852 = vadd.f32 %v846, %v850
    %v853 = vld [vmem:[%s2] sm:$0x7]
    %vm854 = vcmp.gt.f32.partialorder %v853, 0.0
    %v855 = vsel %vm854, 1, 0
    %v856 = vlaneseq
    %v857 = vshrl.u32 %v856, 7
    %v858 = vsub.s32 0, %v857
    %v859 = vrot.slane %v855, %v858
    %v860 = vlaneseq
    %v861 = vshrl.u32 %v860, 7
    %v862 = vsub.s32 1, %v861
    %v863 = vrot.slane %v855, %v862
    %v864 = vlaneseq
    %v865 = vshrl.u32 %v864, 7
    %v866 = vsub.s32 2, %v865
    %v867 = vrot.slane %v855, %v866
    %vm868 = vcmp.eq.s32.totalorder %v859, 1
    %vm869 = vcmp.eq.s32.totalorder %v863, 1
    %vm870 = vcmp.eq.s32.totalorder %v867, 1
    %v872 = vcombine.high %v851, %v851
    %v874 = vsel %vm868, %v851, 0.0
    %v875 = vsel %vm869, %v872, 0.0
    %v876 = vsel %vm870, %v852, 0.0
    %vm877 = vcmask 1041408
    %v878 = vsel %vm877, %v874, 0.0
    %v879 = vsel %vm877, %v875, 0.0
    %v880 = vadd.f32 %v878, %v879
    %v881 = vsel %vm877, %v876, 0.0
    %v882 = vadd.f32 %v880, %v881
    %883 = vadd.xlane.f32.xlu0 %v882
    %v884 = vpop.xlane.xlu0 %883
    %v885 = vsel %vm877, %v884, 0.0
    %v886 = vrot.slane %v885, 4
    %v887 = vadd.f32 %v885, %v886
    %v888 = vrot.slane %v887, 2
    %v889 = vadd.f32 %v887, %v888
    %v890 = vrot.slane %v889, 1
    %v891 = vadd.f32 %v889, %v890
    %v892 = vmul.f32 %v891, 0.0019455253
    %vm893 = vcmask 0
    %894 = vst.msk [vmem:[#allocation9] sm:$0x1] %vm893, %v892
    // Predicated region
    $region22: #{tpu_custom_call.1} parent=1 // pred_check
      _
    $region23: #{tpu_custom_call.1} parent=1 // pred_check_branch
      %896 = sbr.rel (0) target = $region25
    $region24: #{tpu_custom_call.1} parent=1 // pred_region
      %s898 = ssub.s32 16, 16
      %899 = vsyncadd [#allocation6], %s898
      %s901 = sshll.u32 [#allocation9], 4
      %s902 = int_to_ptr.vmem [resolvable:$true] %s901
      %904 = dma.vmem_to_hbm [thread:$0]  %s902, 16, %s3, [#allocation6]
    $region25: #{tpu_custom_call.1} parent=1 // pred_fallthru
      _
    // Predicated region
    $region26: #{tpu_custom_call.1} parent=1 // pred_check
      _
    $region27: #{tpu_custom_call.1} parent=1 // pred_check_branch
      %906 = sbr.rel (0) target = $region29
    $region28: #{tpu_custom_call.1} parent=1 // pred_region
      %907 = dma.done [#allocation6], 16
    $region29: #{tpu_custom_call.1} parent=1 // pred_fallthru
      _
    %908 = vsyncpa [#allocation5], 1
    %909 = vsyncpa [#allocation8], 1
    %910 = vsyncpa [#allocation6], 1

</llo_original>
